<compile_context>
chip_gen: v7x
topology: tpu7x:2x2x1
jax: 0.10.0
libtpu: 0.0.40
codegen_flags: <defaults>
</compile_context>

<pallas_src>
import functools

import jax
import jax.numpy as jnp
from jax.experimental import pallas as pl
from jax.experimental.pallas import tpu as pltpu

_LN_EPS = 1e-5
_PATCH = 4
_TM_CAP_BIG = 512      # v5e / v6e (128 MiB physical VMEM)
_TM_CAP_SMALL = 256    # v7x (64 MiB physical VMEM)


# ---------------------------------------------------------------------------
# Generation-aware tiling / VMEM budget
# ---------------------------------------------------------------------------

def _tpu_vmem_bytes():
    try:
        return int(pltpu.get_tpu_info().vmem_capacity_bytes)
    except Exception:
        return 64 * 1024 * 1024           # conservative fallback (v7x-sized)


def _vmem_limit():
    # ~15% headroom below physical VMEM for compiler-internal scratch.
    return int(_tpu_vmem_bytes() * 0.85)


def _tm_cap():
    return _TM_CAP_BIG if _tpu_vmem_bytes() >= (100 << 20) else _TM_CAP_SMALL


def _round_up(x, m):
    return ((x + m - 1) // m) * m


def _pick_tiling(m, cap):
    """Pick a row-tile size; prefer a tile that divides M exactly so no padded
    rows are materialized or carried through the blocks."""
    m8 = _round_up(m, 8)
    if m8 <= cap:
        return m8, m8
    best, t = 8, 8
    while t <= cap:
        if m8 % t == 0:
            best = t
        t += 8
    if best >= 64:
        return best, m8
    # No decent divisor: pad M up to a multiple of a cap-sized tile.
    return cap, _round_up(m, cap)


def _compiler_params(dimension_semantics):
    return pltpu.CompilerParams(dimension_semantics=dimension_semantics,
                                vmem_limit_bytes=_vmem_limit())


# ---------------------------------------------------------------------------
# In-kernel helpers (2-D ops only: the most robust Mosaic lowering path)
# ---------------------------------------------------------------------------

def _ln_rows(x, g, b, eps):
    """LayerNorm over the last axis of a (tm, C) f32 tile; g/b are (1, C)."""
    mu = jnp.mean(x, axis=-1, keepdims=True)
    xc = x - mu
    var = jnp.mean(xc * xc, axis=-1, keepdims=True)
    return xc * jax.lax.rsqrt(var + eps) * g + b


# ---------------------------------------------------------------------------
# Pallas kernels
# ---------------------------------------------------------------------------

def _patch_embed_kernel(p_ref, w_ref, b_ref, o_ref):
    # p and w are bf16 (MXU operands), f32 accumulation.
    o_ref[...] = (jnp.dot(p_ref[...], w_ref[...],
                          preferred_element_type=jnp.float32)
                  + b_ref[...]).astype(o_ref.dtype)


def _stage_kernel(tok_ref, ln1_g_ref, ln1_b_ref, qkv_w_ref, qkv_b_ref,
                  rep_ref, seg_ref, segT_ref, wsum_ref, perm_ref,
                  ln2_g_ref, ln2_b_ref, fc1_w_ref, fc1_b_ref,
                  fc2_w_ref, fc2_b_ref, o_ref, *, num_heads, head_dim, eps):
    """One whole Swin stage on one row tile.  grid = (row_tiles, n_blocks);
    the row tile lives in the (VMEM-resident) output block across the inner
    block axis, so it only touches HBM once per stage."""
    f32, bf16 = jnp.float32, jnp.bfloat16
    nh, hd = num_heads, head_dim
    C = o_ref.shape[-1]
    b = pl.program_id(1)

    @pl.when(b == 0)
    def _():
        o_ref[...] = tok_ref[...]          # load residual stream at stage entry

    tok = o_ref[...]                                              # (tm, C) f32

    # --- attention branch: LN1 -> fused QKV -> head-axis attention ----------
    h1 = _ln_rows(tok, ln1_g_ref[...], ln1_b_ref[...], eps).astype(bf16)
    qkv = jnp.dot(h1, qkv_w_ref[...], preferred_element_type=f32) + qkv_b_ref[...]
    # Softmax scale is pre-folded into the q third of qkv_w / qkv_b host-side.
    q_bf = qkv[:, :C].astype(bf16)
    k = qkv[:, C:2 * C]
    v = qkv[:, 2 * C:]

    rep, seg, segT, wsum = rep_ref[...], seg_ref[...], segT_ref[...], wsum_ref[...]

    slabs = []
    # Static unroll over heads (nh is small): dynamic lane slicing has no
    # robust Mosaic lowering; the per-iteration live output is only one
    # (tm, hd) slab — the (tm, C) temporaries are consumed inside the body.
    for hh in range(nh):
        q_rep = jnp.dot(q_bf[:, hh * hd:(hh + 1) * hd], rep,
                        preferred_element_type=f32)               # (tm, C)
        s = jnp.dot((q_rep * k).astype(bf16), seg,
                    preferred_element_type=f32)                   # (tm, nh)
        s = s - jnp.max(s, axis=-1, keepdims=True)
        e = jnp.exp(s)
        p = e / jnp.sum(e, axis=-1, keepdims=True)                # softmax over heads
        p_full = jnp.dot(p.astype(bf16), segT,
                         preferred_element_type=f32)              # (tm, C)
        slabs.append(jnp.dot((p_full * v).astype(bf16), wsum,
                             preferred_element_type=f32))         # (tm, hd)
    out_hm = jnp.concatenate(slabs, axis=-1)                      # (tm, C) head-major
    # Single permutation matmul realises the reference's (head_dim, num_heads)
    # channel interleave; LayerScale gamma1 is folded into `perm` host-side.
    # NOTE: the reference forward never applies attention's self.proj.
    tok = tok + jnp.dot(out_hm.astype(bf16), perm_ref[...],
                        preferred_element_type=f32)               # residual 1

    # --- MLP branch: LN2 -> fc1 -> GELU -> fc2 (gamma2 folded into fc2) -----
    h2 = _ln_rows(tok, ln2_g_ref[...], ln2_b_ref[...], eps).astype(bf16)
    m = jnp.dot(h2, fc1_w_ref[...], preferred_element_type=f32) + fc1_b_ref[...]
    # TODO(synk): tanh-approx GELU; exact erf GELU has no robust Mosaic lowering.
    m = jax.nn.gelu(m, approximate=True)
    m = jnp.dot(m.astype(bf16), fc2_w_ref[...], preferred_element_type=f32)
    tok = tok + m + fc2_b_ref[...]                                # residual 2

    o_ref[...] = tok


# ---------------------------------------------------------------------------
# Wrappers
# ---------------------------------------------------------------------------

def patch_embed(p_bf16, w_bf16, b, tm):
    Mp, K = p_bf16.shape
    C = w_bf16.shape[1]
    return pl.pallas_call(
        _patch_embed_kernel,
        out_shape=jax.ShapeDtypeStruct((Mp, C), jnp.float32),
        grid=(Mp // tm,),
        in_specs=[
            pl.BlockSpec((tm, K), lambda i: (i, 0)),
            pl.BlockSpec((K, C), lambda i: (0, 0)),
            pl.BlockSpec((1, C), lambda i: (0, 0)),
        ],
        out_specs=pl.BlockSpec((tm, C), lambda i: (i, 0)),
        compiler_params=_compiler_params(("parallel",)),
    )(p_bf16, w_bf16, b.reshape(1, C).astype(jnp.float32))


def _prep_stage(stage, C):
    """Host-side parameter prep: stack per-block weights on a leading axis,
    fold softmax scale / gamma1 / gamma2, build the bf16 one-hot matrices."""
    nh = stage["num_heads"]
    hd = C // nh
    blocks = stage["blocks"]
    f32, bf16 = jnp.float32, jnp.bfloat16
    scale = float(hd) ** -0.5
    hidden = blocks[0]["fc1_b"].shape[0]

    def stack_vec(key, width):
        return jnp.stack([blk[key].reshape(1, width) for blk in blocks]).astype(f32)

    qkv_w = jnp.stack([
        jnp.concatenate([blk["q_w"] * scale, blk["k_w"], blk["v_w"]], axis=1)
        for blk in blocks]).astype(bf16)                             # (nb, C, 3C)
    qkv_b = jnp.stack([
        jnp.concatenate([blk["q_b"] * scale, blk["k_b"], blk["v_b"]]).reshape(1, 3 * C)
        for blk in blocks]).astype(f32)                              # (nb, 1, 3C)

    ch = jnp.arange(C)
    d_of, h_of = ch % hd, ch // hd
    rep = (d_of[None, :] == jnp.arange(hd)[:, None]).astype(bf16)    # (hd, C)
    seg = (h_of[:, None] == jnp.arange(nh)[None, :]).astype(bf16)    # (C, nh)
    segT = jnp.transpose(seg)                                        # (nh, C)
    wsum = (d_of[:, None] == jnp.arange(hd)[None, :]).astype(bf16)   # (C, hd)
    perm = (d_of[:, None] * nh + h_of[:, None] == ch[None, :]).astype(f32)  # (C, C)
    perm_g1 = jnp.stack([(perm * blk["ls_gamma1"][None, :]).astype(bf16)
                         for blk in blocks])                         # (nb, C, C)

    fc1_w = jnp.stack([blk["fc1_w"] for blk in blocks]).astype(bf16)
    fc2_w_g2 = jnp.stack([blk["fc2_w"] * blk["ls_gamma2"][None, :]
                          for blk in blocks]).astype(bf16)
    fc2_b_g2 = jnp.stack([(blk["fc2_b"] * blk["ls_gamma2"]).reshape(1, C)
                          for blk in blocks]).astype(f32)

    return {
        "num_heads": nh,
        "ln1_g": stack_vec("ln1_g", C), "ln1_b": stack_vec("ln1_b", C),
        "qkv_w": qkv_w, "qkv_b": qkv_b,
        "rep": rep, "seg": seg, "segT": segT, "wsum": wsum,
        "perm_g1": perm_g1,
        "ln2_g": stack_vec("ln2_g", C), "ln2_b": stack_vec("ln2_b", C),
        "fc1_w": fc1_w, "fc1_b": stack_vec("fc1_b", hidden),
        "fc2_w_g2": fc2_w_g2, "fc2_b_g2": fc2_b_g2,
    }


def swin_stage(tok, sp, tm):
    Mp, C = tok.shape
    nh = sp["num_heads"]
    hd = C // nh
    nb = sp["qkv_w"].shape[0]
    hidden = sp["fc1_w"].shape[-1]
    kernel = functools.partial(_stage_kernel, num_heads=nh, head_dim=hd, eps=_LN_EPS)

    row = lambda i, b: (i, 0)
    blk = lambda i, b: (b, 0, 0)
    shared = lambda i, b: (0, 0)

    # TODO(synk): on v7x the shared one-hot matrices could be single-buffered
    # (pipeline_mode=pl.Buffered(1)); kept at default buffering for robustness.
    in_specs = [
        pl.BlockSpec((tm, C), row),                 # tok (residual stream)
        pl.BlockSpec((None, 1, C), blk),            # ln1_g
        pl.BlockSpec((None, 1, C), blk),            # ln1_b
        pl.BlockSpec((None, C, 3 * C), blk),        # qkv_w  (bf16, q pre-scaled)
        pl.BlockSpec((None, 1, 3 * C), blk),        # qkv_b
        pl.BlockSpec((hd, C), shared),              # rep    (bf16)
        pl.BlockSpec((C, nh), shared),              # seg    (bf16)
        pl.BlockSpec((nh, C), shared),              # segT   (bf16)
        pl.BlockSpec((C, hd), shared),              # wsum   (bf16)
        pl.BlockSpec((None, C, C), blk),            # perm_g1 (bf16, gamma1 folded)
        pl.BlockSpec((None, 1, C), blk),            # ln2_g
        pl.BlockSpec((None, 1, C), blk),            # ln2_b
        pl.BlockSpec((None, C, hidden), blk),       # fc1_w  (bf16)
        pl.BlockSpec((None, 1, hidden), blk),       # fc1_b
        pl.BlockSpec((None, hidden, C), blk),       # fc2_w  (bf16, gamma2 folded)
        pl.BlockSpec((None, 1, C), blk),            # fc2_b  (gamma2 folded)
    ]
    return pl.pallas_call(
        kernel,
        out_shape=jax.ShapeDtypeStruct((Mp, C), tok.dtype),
        grid=(Mp // tm, nb),
        in_specs=in_specs,
        out_specs=pl.BlockSpec((tm, C), row),
        compiler_params=_compiler_params(("parallel", "arbitrary")),
    )(tok,
      sp["ln1_g"], sp["ln1_b"], sp["qkv_w"], sp["qkv_b"],
      sp["rep"], sp["seg"], sp["segT"], sp["wsum"], sp["perm_g1"],
      sp["ln2_g"], sp["ln2_b"], sp["fc1_w"], sp["fc1_b"],
      sp["fc2_w_g2"], sp["fc2_b_g2"])


def encoder_forward(x, params):
    B, Cin, D, H, W = x.shape
    kk = _PATCH
    Do, Ho, Wo = D // kk, H // kk, W // kk
    M = B * Do * Ho * Wo
    C = params["pe_b"].shape[0]

    # im2col for the kernel-4 / stride-4 Conv3d patch embedding.
    # TODO(synk): the 6-D rearrange stays in plain JAX; it has no clean
    # BlockSpec form.  Cast to bf16 to halve the HBM read of the M x K matrix.
    p = x.reshape(B, Cin, Do, kk, Ho, kk, Wo, kk)
    p = p.transpose(0, 2, 4, 6, 1, 3, 5, 7).reshape(M, Cin * kk ** 3)
    p = p.astype(jnp.bfloat16)

    tm, Mp = _pick_tiling(M, _tm_cap())
    if Mp != M:
        p = jnp.pad(p, ((0, Mp - M), (0, 0)))

    # TODO(synk): if embed_dim is not a multiple of 128 (e.g. the module's
    # default 126), zero-padding C/hidden to 128 multiples would keep stores
    # lane-dense; not done here because it interacts with the head interleave.
    tok = patch_embed(p, params["pe_w"].astype(jnp.bfloat16), params["pe_b"], tm)

    features = []
    for stage in params["stages"]:
        tok = swin_stage(tok, _prep_stage(stage, C), tm)          # [Mp, C] f32
        feat = tok[:M].reshape(B, Do, Ho, Wo, C).transpose(0, 4, 1, 2, 3)  # NCDHW
        features.append(feat)
    return features


# ---------------------------------------------------------------------------
# Parameters + pure-JAX reference (for a loose numerical self-check)
# ---------------------------------------------------------------------------

def init_params(key, in_channels, embed_dim, depths, num_heads, mlp_ratio,
                ls_init=1e-5):
    hidden = int(embed_dim * mlp_ratio)
    keys = iter(jax.random.split(key, 2 + sum(depths) * 10))

    def nrm(shape, scale=0.02):
        return scale * jax.random.normal(next(keys), shape, dtype=jnp.float32)

    params = {"pe_w": nrm((in_channels * _PATCH ** 3, embed_dim)),
              "pe_b": nrm((embed_dim,)), "stages": []}
    for i, d in enumerate(depths):
        blocks = []
        for _ in range(d):
            blocks.append({
                "ln1_g": jnp.ones((embed_dim,), jnp.float32),
                "ln1_b": jnp.zeros((embed_dim,), jnp.float32),
                "ln2_g": jnp.ones((embed_dim,), jnp.float32),
                "ln2_b": jnp.zeros((embed_dim,), jnp.float32),
                "q_w": nrm((embed_dim, embed_dim)), "k_w": nrm((embed_dim, embed_dim)),
                "v_w": nrm((embed_dim, embed_dim)),
                "q_b": nrm((embed_dim,)), "k_b": nrm((embed_dim,)), "v_b": nrm((embed_dim,)),
                # TODO(synk): Mlp wraps an external ResMLP class not present in
                # the source; approximated by a per-token Linear->GELU->Linear.
                "fc1_w": nrm((embed_dim, hidden)), "fc1_b": nrm((hidden,)),
                "fc2_w": nrm((hidden, embed_dim)), "fc2_b": nrm((embed_dim,)),
                "ls_gamma1": ls_init * jnp.ones((embed_dim,), jnp.float32),
                "ls_gamma2": ls_init * jnp.ones((embed_dim,), jnp.float32),
            })
        params["stages"].append({"num_heads": num_heads[i], "blocks": blocks})
    return params


def _reference_forward(x, params):
    B, Cin, D, H, W = x.shape
    kk = _PATCH
    Do, Ho, Wo = D // kk, H // kk, W // kk
    M = B * Do * Ho * Wo
    C = params["pe_b"].shape[0]
    p = x.reshape(B, Cin, Do, kk, Ho, kk, Wo, kk)
    p = p.transpose(0, 2, 4, 6, 1, 3, 5, 7).reshape(M, Cin * kk ** 3)
    tok = p @ params["pe_w"] + params["pe_b"]

    def ln(v, g, b):
        mu = v.mean(-1, keepdims=True)
        xc = v - mu
        var = (xc * xc).mean(-1, keepdims=True)
        return xc * jax.lax.rsqrt(var + _LN_EPS) * g + b

    feats = []
    for stage in params["stages"]:
        nh = stage["num_heads"]
        hd = C // nh
        for blk in stage["blocks"]:
            h = ln(tok, blk["ln1_g"], blk["ln1_b"])
            q = (h @ blk["q_w"] + blk["q_b"]).reshape(M, nh, hd)
            k = (h @ blk["k_w"] + blk["k_b"]).reshape(M, nh, hd)
            v = (h @ blk["v_w"] + blk["v_b"]).reshape(M, nh, hd)
            s = jnp.einsum("tid,tjd->tij", q, k) * (float(hd) ** -0.5)
            a = jax.nn.softmax(s, axis=-1)
            o = jnp.einsum("tij,tjd->tid", a, v)
            o = jnp.transpose(o, (0, 2, 1)).reshape(M, C)   # (head_dim, heads) interleave
            tok = tok + blk["ls_gamma1"] * o                # reference never applies proj
            h = ln(tok, blk["ln2_g"], blk["ln2_b"])
            h = jax.nn.gelu(h @ blk["fc1_w"] + blk["fc1_b"], approximate=True)
            h = h @ blk["fc2_w"] + blk["fc2_b"]
            tok = tok + blk["ls_gamma2"] * h
        feats.append(tok.reshape(B, Do, Ho, Wo, C).transpose(0, 4, 1, 2, 3))
    return feats


if __name__ == "__main__":
    key = jax.random.PRNGKey(0)
    kx, kp = jax.random.split(key)

    # Small config consistent with the module (patch=4, per-stage Swin blocks).
    # embed_dim=128 keeps every tile lane-dense (multiple of 128).
    B, Cin, S = 2, 2, 16
    embed_dim = 128
    depths = (2, 2)
    num_heads = (4, 8)
    mlp_ratio = 2.0

    x = jax.random.normal(kx, (B, Cin, S, S, S), dtype=jnp.float32)
    # ls_init raised from the module default 1e-5 so the attention/MLP branches
    # contribute visibly and the numerical self-check is meaningful.
    params = init_params(kp, Cin, embed_dim, depths, num_heads, mlp_ratio,
                         ls_init=0.5)

    feats = encoder_forward(x, params)
    feats = jax.block_until_ready(feats)

    refs = _reference_forward(x, params)
    assert len(feats) == len(depths)
    for f, r in zip(feats, refs):
        assert f.shape == (B, embed_dim, S // 4, S // 4, S // 4)
        assert bool(jnp.all(jnp.isfinite(f)))
        err = float(jnp.max(jnp.abs(f - r)))
        assert err < 5e-2, f"max abs err {err}"
    print("KERNEL_OK")
</pallas_src>

<mosaic_0001>
module attributes {stable_mosaic.version = 11 : i64} {
  func.func @_patch_embed_kernel(%arg0: i32, %arg1: memref<128x128xbf16, #tpu.memory_space<vmem>>, %arg2: memref<128x128xbf16, #tpu.memory_space<vmem>>, %arg3: memref<1x128xf32, #tpu.memory_space<vmem>>, %arg4: memref<128x128xf32, #tpu.memory_space<vmem>>) attributes {dimension_semantics = [#tpu.dimension_semantics<parallel>], iteration_bounds = array<i64: 1>, scalar_prefetch = 0 : i64, scratch_operands = 0 : i64, tpu.core_type = #tpu.core_type<tc>, window_params = [{transform_indices = @transform_0, window_bounds = array<i64: 128, 128>}, {pipeline_mode = #tpu.pipeline_mode<synchronous>, transform_indices = @transform_1, window_bounds = array<i64: 128, 128>}, {pipeline_mode = #tpu.pipeline_mode<synchronous>, transform_indices = @transform_2, window_bounds = array<i64: 1, 128>}, {transform_indices = @transform_3, window_bounds = array<i64: 128, 128>}]} {
    %c0 = arith.constant 0 : index
    %c0_0 = arith.constant 0 : index
    %0 = vector.load %arg1[%c0, %c0_0] : memref<128x128xbf16, #tpu.memory_space<vmem>>, vector<128x128xbf16>
    %c0_1 = arith.constant 0 : index
    %c0_2 = arith.constant 0 : index
    %1 = vector.load %arg2[%c0_1, %c0_2] : memref<128x128xbf16, #tpu.memory_space<vmem>>, vector<128x128xbf16>
    %cst = arith.constant dense<0.000000e+00> : vector<128x128xf32>
    %2 = tpu.matmul %0, %1, %cst {dimension_numbers = #tpu.dot_dimension_numbers<[1], [0], [0], [1], [0, 0, 1, 1], [], []>} : vector<128x128xbf16>, vector<128x128xbf16>, vector<128x128xf32> -> vector<128x128xf32>
    %c0_3 = arith.constant 0 : index
    %c0_4 = arith.constant 0 : index
    %3 = vector.load %arg3[%c0_3, %c0_4] : memref<1x128xf32, #tpu.memory_space<vmem>>, vector<1x128xf32>
    %4 = vector.broadcast %3 : vector<1x128xf32> to vector<128x128xf32>
    %5 = arith.addf %2, %4 : vector<128x128xf32>
    %c0_5 = arith.constant 0 : index
    %c0_6 = arith.constant 0 : index
    %6 = vector.load %arg4[%c0_5, %c0_6] : memref<128x128xf32, #tpu.memory_space<vmem>>, vector<128x128xf32>
    tpu.vector_store %arg4[%c0_5, %c0_6], %5 {strides = array<i32>} : memref<128x128xf32, #tpu.memory_space<vmem>>, vector<128x128xf32>,
    return
  }
  func.func @transform_0(%arg0: i32) -> (i32, i32) {
    %c0_i32 = arith.constant 0 : i32
    %c0_i32_0 = arith.constant 0 : i32
    return %arg0, %c0_i32 : i32, i32
  }
  func.func @transform_1(%arg0: i32) -> (i32, i32) {
    %c0_i32 = arith.constant 0 : i32
    %c0_i32_0 = arith.constant 0 : i32
    %c0_i32_1 = arith.constant 0 : i32
    return %c0_i32, %c0_i32_0 : i32, i32
  }
  func.func @transform_2(%arg0: i32) -> (i32, i32) {
    %c0_i32 = arith.constant 0 : i32
    %c0_i32_0 = arith.constant 0 : i32
    %c0_i32_1 = arith.constant 0 : i32
    return %c0_i32, %c0_i32_0 : i32, i32
  }
  func.func @transform_3(%arg0: i32) -> (i32, i32) {
    %c0_i32 = arith.constant 0 : i32
    %c0_i32_0 = arith.constant 0 : i32
    return %arg0, %c0_i32 : i32, i32
  }
}

</mosaic_0001>

<llo_original>
// kernel: tpu_custom_call.1
$region0: #{tpu_custom_call.1}
  #allocation0 [shape = 'u32[]', space=smem, size = 0x4, offset = 0x4, fixed_abs, tag = 'smem constant byte address 0x4 - core index']
  #allocation1 [shape = 'u32[144,128]{1,0:T(1,128)}', space=vmem, size = 0x12000, scoped, tag = 'internal scratch']
  %s0 = inlined_call_operand.hbm [shape: bf16[128,128], index: 0, kind: input, shape index: {}]
  %s1 = inlined_call_operand.hbm [shape: bf16[128,128], index: 1, kind: input, shape index: {}]
  %s2 = inlined_call_operand.vmem [shape: f32[1,128], index: 2, kind: input, shape index: {}]
  %s3 = inlined_call_operand.hbm [shape: f32[128,128], index: 3, kind: output, shape index: {}]
  %s4 = sld [smem:[#allocation0]]
  $region30: #{tpu_custom_call.1} parent=0
    _
  %s6 = ssub.s32 1, %s4
  %s7 = scalar_select 0, %s6, %s4
  $region1: #{tpu_custom_call.1} parent=0
    #allocation2 [shape = 'u8[32768]{0}', space=vmem, size = 0x8000, scoped, tag = 'input window, operand 0, single buffered']
    #allocation3 [shape = 's32[1]{0}', space=sflag, size = 0x4, scoped, tag = 'scoped memory for tpu_custom_call.1']
    #allocation4 [shape = 's32[1]{0}', space=sflag, size = 0x4, scoped, tag = 'scoped memory for tpu_custom_call.1']
    #allocation5 [shape = 'u8[32768]{0}', space=vmem, size = 0x8000, scoped, tag = 'input window, operand 1, single buffered']
    #allocation6 [shape = 's32[1]{0}', space=sflag, size = 0x4, scoped, tag = 'scoped memory for tpu_custom_call.1']
    #allocation7 [shape = 'u8[65536]{0}', space=vmem, size = 0x10000, scoped, tag = 'output window, operand 0, single buffered']
    %8 = vsyncpa [#allocation3], 0
    %9 = vsyncpa [#allocation6], 0
    %10 = vsyncpa [#allocation4], 0
    // Predicated region
    $region2: #{tpu_custom_call.1} parent=1 // pred_check
      _
    $region3: #{tpu_custom_call.1} parent=1 // pred_check_branch
      %12 = sbr.rel (0) target = $region5
    $region4: #{tpu_custom_call.1} parent=1 // pred_region
      %s14 = ssub.s32 1024, 1024
      %15 = vsyncadd [#allocation3], %s14
      %s16 = sshll.u32 [#allocation2], 4
      %s17 = int_to_ptr.vmem [resolvable:$true] %s16
      %22 = dma.hbm_to_vmem [thread:$0]  %s0, 1024, %s17, [#allocation3], 64, 64, 4
    $region5: #{tpu_custom_call.1} parent=1 // pred_fallthru
      _
    // Predicated region
    $region6: #{tpu_custom_call.1} parent=1 // pred_check
      _
    $region7: #{tpu_custom_call.1} parent=1 // pred_check_branch
      %24 = sbr.rel (0) target = $region9
    $region8: #{tpu_custom_call.1} parent=1 // pred_region
      %s26 = ssub.s32 1024, 1024
      %27 = vsyncadd [#allocation6], %s26
      %s28 = sshll.u32 [#allocation5], 4
      %s29 = int_to_ptr.vmem [resolvable:$true] %s28
      %34 = dma.hbm_to_vmem [thread:$0]  %s1, 1024, %s29, [#allocation6], 64, 64, 4
    $region9: #{tpu_custom_call.1} parent=1 // pred_fallthru
      _
    // Predicated region
    $region10: #{tpu_custom_call.1} parent=1 // pred_check
      _
    $region11: #{tpu_custom_call.1} parent=1 // pred_check_branch
      %36 = sbr.rel (0) target = $region13
    $region12: #{tpu_custom_call.1} parent=1 // pred_region
      _
    $region13: #{tpu_custom_call.1} parent=1 // pred_fallthru
      _
    // Predicated region
    $region14: #{tpu_custom_call.1} parent=1 // pred_check
      _
    $region15: #{tpu_custom_call.1} parent=1 // pred_check_branch
      %38 = sbr.rel (0) target = $region17
    $region16: #{tpu_custom_call.1} parent=1 // pred_region
      %39 = dma.done [#allocation3], 1024
    $region17: #{tpu_custom_call.1} parent=1 // pred_fallthru
      _
    // Predicated region
    $region18: #{tpu_custom_call.1} parent=1 // pred_check
      _
    $region19: #{tpu_custom_call.1} parent=1 // pred_check_branch
      %41 = sbr.rel (0) target = $region21
    $region20: #{tpu_custom_call.1} parent=1 // pred_region
      %42 = dma.done [#allocation6], 1024
    $region21: #{tpu_custom_call.1} parent=1 // pred_fallthru
      _
    %v44 = vld [vmem:[#allocation2] sm:$0xf]
    %v45 = vld [vmem:[#allocation2 + $0x4] sm:$0xf]
    %v46 = vld [vmem:[#allocation2 + $0x8] sm:$0xf]
    %v47 = vld [vmem:[#allocation2 + $0xc] sm:$0xf]
    %v48 = vld [vmem:[#allocation2 + $0x10] sm:$0xf]
    %v49 = vld [vmem:[#allocation2 + $0x14] sm:$0xf]
    %v50 = vld [vmem:[#allocation2 + $0x18] sm:$0xf]
    %v51 = vld [vmem:[#allocation2 + $0x1c] sm:$0xf]
    %v52 = vld [vmem:[#allocation2 + $0x20] sm:$0xf]
    %v53 = vld [vmem:[#allocation2 + $0x24] sm:$0xf]
    %v54 = vld [vmem:[#allocation2 + $0x28] sm:$0xf]
    %v55 = vld [vmem:[#allocation2 + $0x2c] sm:$0xf]
    %v56 = vld [vmem:[#allocation2 + $0x30] sm:$0xf]
    %v57 = vld [vmem:[#allocation2 + $0x34] sm:$0xf]
    %v58 = vld [vmem:[#allocation2 + $0x38] sm:$0xf]
    %v59 = vld [vmem:[#allocation2 + $0x3c] sm:$0xf]
    %v60 = vld [vmem:[#allocation5] sm:$0xf]
    %v61 = vld [vmem:[#allocation5 + $0x4] sm:$0xf]
    %v62 = vld [vmem:[#allocation5 + $0x8] sm:$0xf]
    %v63 = vld [vmem:[#allocation5 + $0xc] sm:$0xf]
    %v64 = vld [vmem:[#allocation5 + $0x10] sm:$0xf]
    %v65 = vld [vmem:[#allocation5 + $0x14] sm:$0xf]
    %v66 = vld [vmem:[#allocation5 + $0x18] sm:$0xf]
    %v67 = vld [vmem:[#allocation5 + $0x1c] sm:$0xf]
    %v68 = vld [vmem:[#allocation5 + $0x20] sm:$0xf]
    %v69 = vld [vmem:[#allocation5 + $0x24] sm:$0xf]
    %v70 = vld [vmem:[#allocation5 + $0x28] sm:$0xf]
    %v71 = vld [vmem:[#allocation5 + $0x2c] sm:$0xf]
    %v72 = vld [vmem:[#allocation5 + $0x30] sm:$0xf]
    %v73 = vld [vmem:[#allocation5 + $0x34] sm:$0xf]
    %v74 = vld [vmem:[#allocation5 + $0x38] sm:$0xf]
    %v75 = vld [vmem:[#allocation5 + $0x3c] sm:$0xf]
    %v76 = vld [vmem:[%s2] sm:$0x1]
    %v78 = vlaneseq
    %v79 = vshrl.u32 %v78, 7
    %v80 = vsub.s32 0, %v79
    %v81 = vrot.slane %v76, %v80
    %v99 = vunpack.c.l.b16 %v44
    %v100 = vunpack.c.l.b16 %v45
    %v101 = vunpack.c.l.b16 %v46
    %v102 = vunpack.c.l.b16 %v47
    %v103 = vunpack.c.l.b16 %v48
    %v104 = vunpack.c.l.b16 %v49
    %v105 = vunpack.c.l.b16 %v50
    %v106 = vunpack.c.l.b16 %v51
    %v107 = vunpack.c.l.b16 %v52
    %v108 = vunpack.c.l.b16 %v53
    %v109 = vunpack.c.l.b16 %v54
    %v110 = vunpack.c.l.b16 %v55
    %v111 = vunpack.c.l.b16 %v56
    %v112 = vunpack.c.l.b16 %v57
    %v113 = vunpack.c.l.b16 %v58
    %v114 = vunpack.c.l.b16 %v59
    %v115 = vpack.c.b16 %v100, %v99
    %v116 = vpack.c.b16 %v102, %v101
    %v117 = vpack.c.b16 %v104, %v103
    %v118 = vpack.c.b16 %v106, %v105
    %v119 = vpack.c.b16 %v108, %v107
    %v120 = vpack.c.b16 %v110, %v109
    %v121 = vpack.c.b16 %v112, %v111
    %v122 = vpack.c.b16 %v114, %v113
    %v147 = vunpack.c.l.b16 %v60
    %v148 = vunpack.c.l.b16 %v61
    %v149 = vunpack.c.l.b16 %v62
    %v150 = vunpack.c.l.b16 %v63
    %v151 = vunpack.c.l.b16 %v64
    %v152 = vunpack.c.l.b16 %v65
    %v153 = vunpack.c.l.b16 %v66
    %v154 = vunpack.c.l.b16 %v67
    %v155 = vunpack.c.l.b16 %v68
    %v156 = vunpack.c.l.b16 %v69
    %v157 = vunpack.c.l.b16 %v70
    %v158 = vunpack.c.l.b16 %v71
    %v159 = vunpack.c.l.b16 %v72
    %v160 = vunpack.c.l.b16 %v73
    %v161 = vunpack.c.l.b16 %v74
    %v162 = vunpack.c.l.b16 %v75
    %v163 = vpack.c.b16 %v148, %v147
    %v164 = vpack.c.b16 %v150, %v149
    %v165 = vpack.c.b16 %v152, %v151
    %v166 = vpack.c.b16 %v154, %v153
    %v167 = vpack.c.b16 %v156, %v155
    %v168 = vpack.c.b16 %v158, %v157
    %v169 = vpack.c.b16 %v160, %v159
    %v170 = vpack.c.b16 %v162, %v161
    %179 = vmatprep.subr.bf16.mxu0 0
    %180 = vmatpush1.bf16.msra.mxu0 %v163
    %181 = vmatprep.subr.bf16.mxu0 0
    %182 = vmatpush1.bf16.msra.mxu0 %v164
    %183 = vmatprep.subr.bf16.mxu0 0
    %184 = vmatpush1.bf16.msra.mxu0 %v165
    %185 = vmatprep.subr.bf16.mxu0 0
    %186 = vmatpush1.bf16.msra.mxu0 %v166
    %187 = vmatprep.subr.bf16.mxu0 0
    %188 = vmatpush1.bf16.msra.mxu0 %v167
    %189 = vmatprep.subr.bf16.mxu0 0
    %190 = vmatpush1.bf16.msra.mxu0 %v168
    %191 = vmatprep.subr.bf16.mxu0 0
    %192 = vmatpush1.bf16.msra.mxu0 %v169
    %193 = vmatprep.subr.bf16.mxu0 0
    %194 = vmatpush1.bf16.msra.mxu0 %v170
    %195 = vmatprep.subr.bf16.mxu0 0
    %196 = vmatpush1.bf16.msra.mxu0 0
    %197 = vmatprep.subr.bf16.mxu0 0
    %198 = vmatpush1.bf16.msra.mxu0 0
    %199 = vmatprep.subr.bf16.mxu0 0
    %200 = vmatpush1.bf16.msra.mxu0 0
    %201 = vmatprep.subr.bf16.mxu0 0
    %202 = vmatpush1.bf16.msra.mxu0 0
    %203 = vmatprep.subr.bf16.mxu0 0
    %204 = vmatpush1.bf16.msra.mxu0 0
    %205 = vmatprep.subr.bf16.mxu0 0
    %206 = vmatpush1.bf16.msra.mxu0 0
    %207 = vmatprep.subr.bf16.mxu0 0
    %208 = vmatpush1.bf16.msra.mxu0 0
    %209 = vmatprep.subr.bf16.mxu0 0
    %210 = vmatpush1.bf16.msra.mxu0 0
    %211 = vmatprep.mubr.bf16.mxu0 0
    %212 = vmatmul.mubr.bf16.gmra.mrb[0].mxu0 %v115
    %v213 = vpop.f32.mrb[0].mxu0
    %v214 = vadd.f32 %v81, %v213
    %v215 = vpop.f32.mrb[0].mxu0
    %v216 = vpop.f32.mrb[0].mxu0
    %v217 = vadd.f32 %v81, %v216
    %v218 = vpop.f32.mrb[0].mxu0
    %219 = vmatprep.mubr.bf16.mxu0 0
    %220 = vmatmul.mubr.bf16.gmra.mrb[0].mxu0 %v116
    %v221 = vpop.f32.mrb[0].mxu0
    %v222 = vadd.f32 %v81, %v221
    %v223 = vpop.f32.mrb[0].mxu0
    %v224 = vpop.f32.mrb[0].mxu0
    %v225 = vadd.f32 %v81, %v224
    %v226 = vpop.f32.mrb[0].mxu0
    %227 = vmatprep.mubr.bf16.mxu0 0
    %228 = vmatmul.mubr.bf16.gmra.mrb[0].mxu0 %v117
    %v229 = vpop.f32.mrb[0].mxu0
    %v230 = vadd.f32 %v81, %v229
    %v231 = vpop.f32.mrb[0].mxu0
    %v232 = vpop.f32.mrb[0].mxu0
    %v233 = vadd.f32 %v81, %v232
    %v234 = vpop.f32.mrb[0].mxu0
    %235 = vmatprep.mubr.bf16.mxu0 0
    %236 = vmatmul.mubr.bf16.gmra.mrb[0].mxu0 %v118
    %v237 = vpop.f32.mrb[0].mxu0
    %v238 = vadd.f32 %v81, %v237
    %v239 = vpop.f32.mrb[0].mxu0
    %v240 = vpop.f32.mrb[0].mxu0
    %v241 = vadd.f32 %v81, %v240
    %v242 = vpop.f32.mrb[0].mxu0
    %243 = vmatprep.mubr.bf16.mxu0 0
    %244 = vmatmul.mubr.bf16.gmra.mrb[0].mxu0 %v119
    %v245 = vpop.f32.mrb[0].mxu0
    %v246 = vadd.f32 %v81, %v245
    %v247 = vpop.f32.mrb[0].mxu0
    %v248 = vpop.f32.mrb[0].mxu0
    %v249 = vadd.f32 %v81, %v248
    %v250 = vpop.f32.mrb[0].mxu0
    %251 = vmatprep.mubr.bf16.mxu0 0
    %252 = vmatmul.mubr.bf16.gmra.mrb[0].mxu0 %v120
    %v253 = vpop.f32.mrb[0].mxu0
    %v254 = vadd.f32 %v81, %v253
    %v255 = vpop.f32.mrb[0].mxu0
    %v256 = vpop.f32.mrb[0].mxu0
    %v257 = vadd.f32 %v81, %v256
    %v258 = vpop.f32.mrb[0].mxu0
    %259 = vmatprep.mubr.bf16.mxu0 0
    %260 = vmatmul.mubr.bf16.gmra.mrb[0].mxu0 %v121
    %v261 = vpop.f32.mrb[0].mxu0
    %v262 = vadd.f32 %v81, %v261
    %v263 = vpop.f32.mrb[0].mxu0
    %v264 = vpop.f32.mrb[0].mxu0
    %v265 = vadd.f32 %v81, %v264
    %v266 = vpop.f32.mrb[0].mxu0
    %267 = vmatprep.mubr.bf16.mxu0 0
    %268 = vmatmul.mubr.bf16.gmra.mrb[0].mxu0 %v122
    %v269 = vpop.f32.mrb[0].mxu0
    %v270 = vadd.f32 %v81, %v269
    %v271 = vpop.f32.mrb[0].mxu0
    %v272 = vpop.f32.mrb[0].mxu0
    %v273 = vadd.f32 %v81, %v272
    %v274 = vpop.f32.mrb[0].mxu0
    %275 = vdwg.mxu0
    %276 = vst [vmem:[#allocation7] sm:$0xff] %v214
    %277 = vst [vmem:[#allocation7 + $0x8] sm:$0xff] %v217
    %278 = vst [vmem:[#allocation7 + $0x10] sm:$0xff] %v222
    %279 = vst [vmem:[#allocation7 + $0x18] sm:$0xff] %v225
    %280 = vst [vmem:[#allocation7 + $0x20] sm:$0xff] %v230
    %281 = vst [vmem:[#allocation7 + $0x28] sm:$0xff] %v233
    %282 = vst [vmem:[#allocation7 + $0x30] sm:$0xff] %v238
    %283 = vst [vmem:[#allocation7 + $0x38] sm:$0xff] %v241
    %284 = vst [vmem:[#allocation7 + $0x40] sm:$0xff] %v246
    %285 = vst [vmem:[#allocation7 + $0x48] sm:$0xff] %v249
    %286 = vst [vmem:[#allocation7 + $0x50] sm:$0xff] %v254
    %287 = vst [vmem:[#allocation7 + $0x58] sm:$0xff] %v257
    %288 = vst [vmem:[#allocation7 + $0x60] sm:$0xff] %v262
    %289 = vst [vmem:[#allocation7 + $0x68] sm:$0xff] %v265
    %290 = vst [vmem:[#allocation7 + $0x70] sm:$0xff] %v270
    %291 = vst [vmem:[#allocation7 + $0x78] sm:$0xff] %v273
    // Predicated region
    $region22: #{tpu_custom_call.1} parent=1 // pred_check
      _
    $region23: #{tpu_custom_call.1} parent=1 // pred_check_branch
      %293 = sbr.rel (0) target = $region25
    $region24: #{tpu_custom_call.1} parent=1 // pred_region
      %s295 = ssub.s32 2048, 2048
      %296 = vsyncadd [#allocation4], %s295
      %s297 = sshll.u32 [#allocation7], 4
      %s298 = int_to_ptr.vmem [resolvable:$true] %s297
      %303 = dma.vmem_to_hbm [thread:$0]  %s298, 2048, %s3, [#allocation4], 128, 128, 8
    $region25: #{tpu_custom_call.1} parent=1 // pred_fallthru
      _
    // Predicated region
    $region26: #{tpu_custom_call.1} parent=1 // pred_check
      _
    $region27: #{tpu_custom_call.1} parent=1 // pred_check_branch
      %305 = sbr.rel (0) target = $region29
    $region28: #{tpu_custom_call.1} parent=1 // pred_region
      %306 = dma.done [#allocation4], 2048
    $region29: #{tpu_custom_call.1} parent=1 // pred_fallthru
      _
    %307 = vsyncpa [#allocation3], 1
    %308 = vsyncpa [#allocation6], 1
    %309 = vsyncpa [#allocation4], 1

</llo_original>
